<compile_context>
chip_gen: v7x
topology: tpu7x:2x2x1
jax: 0.10.0
libtpu: 0.0.40
codegen_flags: <defaults>
</compile_context>

<pallas_src>
import functools

import jax
import jax.numpy as jnp
from jax.experimental import pallas as pl
from jax.experimental.pallas import tpu as pltpu


LANES = 128
SUBLANES = 8
# Combined HBM bytes (inputs + targets) streamed per grid step.
MAX_STEP_BYTES = 16 << 20
VMEM_LIMIT_BYTES = 48 << 20


def _iou_kernel(x_ref, t_ref, inter_ref, total_ref, *, last_valid_rows, has_edge):
    x = x_ref[...].astype(jnp.float32)
    t = t_ref[...].astype(jnp.float32)

    # sigmoid(x) = 0.5 * tanh(0.5 * x) + 0.5  (single EUP push per element).
    s = 0.5 * jnp.tanh(0.5 * x) + 0.5

    def reduce_and_store(sv, tv):
        inter = jnp.sum(sv * tv)
        total = jnp.sum(sv + tv)
        # Broadcast into a full (1, 8, 128) block so the store is an unmasked,
        # lane-dense vst; the wrapper reads [:, 0, 0].
        inter_ref[...] = jnp.full(inter_ref.shape, inter, dtype=jnp.float32)
        total_ref[...] = jnp.full(total_ref.shape, total, dtype=jnp.float32)

    if not has_edge:
        reduce_and_store(s, t)
    else:
        last = pl.num_programs(0) - 1
        i = pl.program_id(0)

        @pl.when(i < last)
        def _():
            reduce_and_store(s, t)

        @pl.when(i == last)
        def _():
            # Only the edge program pays for the mask: rows >= last_valid_rows
            # of this block lie past the end of the array (stale/garbage VMEM).
            # Mask immediately after compute, before the reductions.
            row = jax.lax.broadcasted_iota(jnp.int32, s.shape, 0)
            valid = row < last_valid_rows
            reduce_and_store(jnp.where(valid, s, 0.0), jnp.where(valid, t, 0.0))


def iou_loss(inputs, targets, smooth=1.0):
    """Pallas equivalent of IoULoss.forward (returns a scalar)."""
    x = inputs.reshape(-1)
    t = targets.reshape(-1)
    n = x.shape[0]

    intersection = jnp.float32(0.0)
    total = jnp.float32(0.0)

    rows = n // LANES
    main_elems = rows * LANES

    if rows >= SUBLANES:
        # Dtype-aware block size: constant HBM bytes per grid step.
        bytes_per_row = LANES * (x.dtype.itemsize + t.dtype.itemsize)
        max_rows = max(SUBLANES,
                       (MAX_STEP_BYTES // bytes_per_row) // SUBLANES * SUBLANES)

        block_rows = min(max_rows, (rows // SUBLANES) * SUBLANES)
        num_blocks = pl.cdiv(rows, block_rows)
        if num_blocks == 1 and rows >= 2 * SUBLANES:
            # Guarantee >= 2 programs so the "parallel" axis can be sharded
            # across both v7x TensorCores (no-op on v5e / v6e).
            half = -(-rows // 2)
            block_rows = ((half + SUBLANES - 1) // SUBLANES) * SUBLANES
            num_blocks = pl.cdiv(rows, block_rows)

        last_valid_rows = rows - (num_blocks - 1) * block_rows
        has_edge = last_valid_rows != block_rows

        # Free reshape whenever n is a multiple of 128 (common NCHW case);
        # only truly ragged inputs pay a slice of the main chunk.
        x2 = (x if main_elems == n else x[:main_elems]).reshape(rows, LANES)
        t2 = (t if main_elems == n else t[:main_elems]).reshape(rows, LANES)

        kernel = functools.partial(
            _iou_kernel, last_valid_rows=last_valid_rows, has_edge=has_edge)

        inter_p, total_p = pl.pallas_call(
            kernel,
            out_shape=(
                jax.ShapeDtypeStruct((num_blocks, SUBLANES, LANES), jnp.float32),
                jax.ShapeDtypeStruct((num_blocks, SUBLANES, LANES), jnp.float32),
            ),
            grid=(num_blocks,),
            in_specs=[
                pl.BlockSpec((block_rows, LANES), lambda i: (i, 0)),
                pl.BlockSpec((block_rows, LANES), lambda i: (i, 0)),
            ],
            out_specs=(
                pl.BlockSpec((1, SUBLANES, LANES), lambda i: (i, 0, 0)),
                pl.BlockSpec((1, SUBLANES, LANES), lambda i: (i, 0, 0)),
            ),
            compiler_params=pltpu.CompilerParams(
                dimension_semantics=("parallel",),
                vmem_limit_bytes=VMEM_LIMIT_BYTES,
            ),
        )(x2, t2)

        intersection = intersection + jnp.sum(inter_p[:, 0, 0])
        total = total + jnp.sum(total_p[:, 0, 0])
    else:
        main_elems = 0  # too small for an (8, 128) tile: all handled below

    if main_elems < n:
        # Tiny tail (< 128 elements, or everything for sub-tile inputs): JAX.
        xr = x[main_elems:].astype(jnp.float32)
        tr = t[main_elems:].astype(jnp.float32)
        sr = jax.nn.sigmoid(xr)
        intersection = intersection + jnp.sum(sr * tr)
        total = total + jnp.sum(sr + tr)

    union = total - intersection
    smooth = jnp.float32(smooth)
    return 1.0 - (intersection + smooth) / (union + smooth)


def iou_loss_ref(inputs, targets, smooth=1.0):
    s = jax.nn.sigmoid(inputs.astype(jnp.float32)).reshape(-1)
    t = targets.astype(jnp.float32).reshape(-1)
    intersection = jnp.sum(s * t)
    total = jnp.sum(s + t)
    union = total - intersection
    return 1.0 - (intersection + smooth) / (union + smooth)


if __name__ == "__main__":
    key = jax.random.PRNGKey(0)
    k1, k2, k3, k4 = jax.random.split(key, 4)

    # Case 1: small NCHW tensors as in the PyTorch module (copy-free path,
    # two programs -> exercises the megacore split, no edge masking).
    B, C, H, W = 2, 4, 16, 16
    inputs = jax.random.normal(k1, (B, C, H, W), dtype=jnp.float32)
    targets = (jax.random.uniform(k2, (B, C, H, W)) > 0.5).astype(jnp.float32)

    loss = jax.block_until_ready(iou_loss(inputs, targets, smooth=1.0))
    ref = iou_loss_ref(inputs, targets, smooth=1.0)
    assert jnp.allclose(loss, ref, atol=1e-4, rtol=1e-4), (loss, ref)

    # Case 2: bf16 inputs with a ragged element count (exercises the edge-only
    # mask in the last program and the < 128-element JAX tail).
    B2, C2, H2, W2 = 2, 4, 63, 66
    inputs2 = jax.random.normal(k3, (B2, C2, H2, W2), dtype=jnp.bfloat16)
    targets2 = (jax.random.uniform(k4, (B2, C2, H2, W2)) > 0.5).astype(jnp.float32)

    loss2 = jax.block_until_ready(iou_loss(inputs2, targets2, smooth=1.0))
    ref2 = iou_loss_ref(inputs2, targets2, smooth=1.0)
    assert jnp.allclose(loss2, ref2, atol=1e-4, rtol=1e-4), (loss2, ref2)

    print("KERNEL_OK")
</pallas_src>

<mosaic_0001>
module attributes {stable_mosaic.version = 11 : i64} {
  func.func @_iou_kernel(%arg0: i32, %arg1: memref<8x128xf32, #tpu.memory_space<vmem>>, %arg2: memref<8x128xf32, #tpu.memory_space<vmem>>, %arg3: memref<1x8x128xf32, #tpu.memory_space<vmem>>, %arg4: memref<1x8x128xf32, #tpu.memory_space<vmem>>) attributes {dimension_semantics = [#tpu.dimension_semantics<parallel>], iteration_bounds = array<i64: 2>, scalar_prefetch = 0 : i64, scratch_operands = 0 : i64, tpu.core_type = #tpu.core_type<tc>, window_params = [{transform_indices = @transform_0, window_bounds = array<i64: 8, 128>}, {transform_indices = @transform_1, window_bounds = array<i64: 8, 128>}, {transform_indices = @transform_2, window_bounds = array<i64: 1, 8, 128>}, {transform_indices = @transform_3, window_bounds = array<i64: 1, 8, 128>}]} {
    %c0 = arith.constant 0 : index
    %c0_0 = arith.constant 0 : index
    %0 = vector.load %arg1[%c0, %c0_0] : memref<8x128xf32, #tpu.memory_space<vmem>>, vector<8x128xf32>
    %c0_1 = arith.constant 0 : index
    %c0_2 = arith.constant 0 : index
    %1 = vector.load %arg2[%c0_1, %c0_2] : memref<8x128xf32, #tpu.memory_space<vmem>>, vector<8x128xf32>
    %cst = arith.constant 5.000000e-01 : f32
    %2 = vector.broadcast %cst : f32 to vector<8x128xf32>
    %3 = arith.mulf %2, %0 : vector<8x128xf32>
    %4 = math.tanh %3 : vector<8x128xf32>
    %cst_3 = arith.constant 5.000000e-01 : f32
    %5 = vector.broadcast %cst_3 : f32 to vector<8x128xf32>
    %6 = arith.mulf %5, %4 : vector<8x128xf32>
    %cst_4 = arith.constant 5.000000e-01 : f32
    %7 = vector.broadcast %cst_4 : f32 to vector<8x128xf32>
    %8 = arith.addf %6, %7 : vector<8x128xf32>
    %9 = arith.mulf %8, %1 : vector<8x128xf32>
    %10 = vector.shape_cast %9 : vector<8x128xf32> to vector<1x8x128xf32>
    %cst_5 = arith.constant dense<0.000000e+00> : vector<1xf32>
    %11 = vector.multi_reduction <add>, %10, %cst_5 [1, 2] : vector<1x8x128xf32> to vector<1xf32>
    %12 = vector.shape_cast %11 : vector<1xf32> to vector<1x1x1xf32>
    %13 = vector.extract %12[0, 0, 0] : f32 from vector<1x1x1xf32>
    %14 = arith.addf %8, %1 : vector<8x128xf32>
    %15 = vector.shape_cast %14 : vector<8x128xf32> to vector<1x8x128xf32>
    %cst_6 = arith.constant dense<0.000000e+00> : vector<1xf32>
    %16 = vector.multi_reduction <add>, %15, %cst_6 [1, 2] : vector<1x8x128xf32> to vector<1xf32>
    %17 = vector.shape_cast %16 : vector<1xf32> to vector<1x1x1xf32>
    %18 = vector.extract %17[0, 0, 0] : f32 from vector<1x1x1xf32>
    %19 = vector.broadcast %13 : f32 to vector<1x8x128xf32>
    %c0_7 = arith.constant 0 : index
    %c0_8 = arith.constant 0 : index
    %c0_9 = arith.constant 0 : index
    %20 = vector.load %arg3[%c0_7, %c0_8, %c0_9] : memref<1x8x128xf32, #tpu.memory_space<vmem>>, vector<1x8x128xf32>
    tpu.vector_store %arg3[%c0_7, %c0_8, %c0_9], %19 {strides = array<i32>} : memref<1x8x128xf32, #tpu.memory_space<vmem>>, vector<1x8x128xf32>,
    %21 = vector.broadcast %18 : f32 to vector<1x8x128xf32>
    %c0_10 = arith.constant 0 : index
    %c0_11 = arith.constant 0 : index
    %c0_12 = arith.constant 0 : index
    %22 = vector.load %arg4[%c0_10, %c0_11, %c0_12] : memref<1x8x128xf32, #tpu.memory_space<vmem>>, vector<1x8x128xf32>
    tpu.vector_store %arg4[%c0_10, %c0_11, %c0_12], %21 {strides = array<i32>} : memref<1x8x128xf32, #tpu.memory_space<vmem>>, vector<1x8x128xf32>,
    return
  }
  func.func @transform_0(%arg0: i32) -> (i32, i32) {
    %c0_i32 = arith.constant 0 : i32
    %c0_i32_0 = arith.constant 0 : i32
    return %arg0, %c0_i32 : i32, i32
  }
  func.func @transform_1(%arg0: i32) -> (i32, i32) {
    %c0_i32 = arith.constant 0 : i32
    %c0_i32_0 = arith.constant 0 : i32
    return %arg0, %c0_i32 : i32, i32
  }
  func.func @transform_2(%arg0: i32) -> (i32, i32, i32) {
    %c0_i32 = arith.constant 0 : i32
    %c0_i32_0 = arith.constant 0 : i32
    %c0_i32_1 = arith.constant 0 : i32
    return %arg0, %c0_i32, %c0_i32_0 : i32, i32, i32
  }
  func.func @transform_3(%arg0: i32) -> (i32, i32, i32) {
    %c0_i32 = arith.constant 0 : i32
    %c0_i32_0 = arith.constant 0 : i32
    %c0_i32_1 = arith.constant 0 : i32
    return %arg0, %c0_i32, %c0_i32_0 : i32, i32, i32
  }
}

</mosaic_0001>

<llo_original>
// kernel: tpu_custom_call.1
$region0: #{tpu_custom_call.1}
  #allocation0 [shape = 'u32[]', space=smem, size = 0x4, offset = 0x4, fixed_abs, tag = 'smem constant byte address 0x4 - core index']
  #allocation1 [shape = 'u32[144,128]{1,0:T(1,128)}', space=vmem, size = 0x12000, scoped, tag = 'internal scratch']
  %s0 = inlined_call_operand.hbm [shape: f32[16,128], index: 0, kind: input, shape index: {}]
  %s1 = inlined_call_operand.hbm [shape: f32[16,128], index: 1, kind: input, shape index: {}]
  %s2 = inlined_call_operand.hbm [shape: f32[2,8,128], index: 2, kind: output, shape index: {0}]
  %s3 = inlined_call_operand.hbm [shape: f32[2,8,128], index: 3, kind: output, shape index: {1}]
  %4 = xla_tuple %s2, %s3
  %s5 = sld [smem:[#allocation0]]
  $region57: #{tpu_custom_call.1} parent=0
    _
  %s7 = ssub.s32 1, %s5
  %s8 = scalar_select 0, %s7, %s5
  $region1: #{tpu_custom_call.1} parent=0
    #allocation2 [shape = 'u8[8192]{0}', space=vmem, size = 0x2000, scoped, tag = 'input window, operand 0']
    #allocation3 [shape = 's32[2]{0}', space=sflag, size = 0x8, scoped, tag = 'scoped memory for tpu_custom_call.1']
    #allocation4 [shape = 's32[2]{0}', space=sflag, size = 0x8, scoped, tag = 'scoped memory for tpu_custom_call.1']
    #allocation5 [shape = 'u8[8192]{0}', space=vmem, size = 0x2000, scoped, tag = 'input window, operand 1']
    #allocation6 [shape = 's32[2]{0}', space=sflag, size = 0x8, scoped, tag = 'scoped memory for tpu_custom_call.1']
    #allocation7 [shape = 'u8[8192]{0}', space=vmem, size = 0x2000, scoped, tag = 'output window, operand 0']
    #allocation8 [shape = 'u8[8192]{0}', space=vmem, size = 0x2000, scoped, tag = 'output window, operand 1']
    #allocation9 [shape = 's32[2]{0}', space=sflag, size = 0x8, scoped, tag = 'scoped memory for tpu_custom_call.1']
    %9 = vsyncpa [#allocation3], 0
    %s10 = scalar_lea.sflag [#allocation3], 1
    %11 = vsyncpa %s10, 0
    %12 = vsyncpa [#allocation6], 0
    %s13 = scalar_lea.sflag [#allocation6], 1
    %14 = vsyncpa %s13, 0
    %15 = vsyncpa [#allocation4], 0
    %s16 = scalar_lea.sflag [#allocation4], 1
    %17 = vsyncpa %s16, 0
    %18 = vsyncpa [#allocation9], 0
    %s19 = scalar_lea.sflag [#allocation9], 1
    %20 = vsyncpa %s19, 0
    loop: start=0, step=1, limit=4
    $region2: #{tpu_custom_call.1} parent=1 // loop_pre_header
      _
    $region3: #{tpu_custom_call.1} parent=1 // loop_header
      %s22 = sphi 0, %s26
      %p23 = scmp.ge.s32.totalorder %s22, 4
      %s32 = sphi 0, %s34
      %s35 = sphi 0, %s32
      %s36 = sphi 0, %s35
      %s52 = sphi 0, %s36
      %s58 = sphi 0, %s60
      %s61 = sphi 0, %s58
      %s62 = sphi 0, %s61
      %s78 = sphi 0, %s62
      %s84 = sphi 0, %s86
      %s87 = sphi 0, %s84
      %s88 = sphi 0, %s87
      %s104 = sphi 0, %s88
      %s110 = sphi 0, %s112
      %s113 = sphi 0, %s110
      %s114 = sphi 0, %s113
      %s130 = sphi 0, %s114
    $region4: #{tpu_custom_call.1} parent=1 // loop_header_branch
      %25 = sbr.rel (%p23) target = $region8
    $region5: #{tpu_custom_call.1} parent=1 // loop_body
      %s27 = ssub.s32 %s22, 1
      %s28 = ssub.s32 %s22, 2
      %s29 = sadd.s32 %s22, 1
      %s30 = ssub.s32 %s22, %s29
      %p31 = scmp.eq.s32.totalorder %s30, 0
      %s33 = sadd.s32 %s32, 1
      %s34 = scalar_select %p31, %s32, %s33
      %p37 = pneg %p31
      %p38 = scmp.eq.s32.totalorder %s22, 1
      %p39 = por %p37, %p38
      %p40 = scmp.ne.s32.totalorder %s32, %s35
      %p41 = scmp.eq.s32.totalorder %s22, 0
      %p42 = por %p40, %p41
      %p43 = scmp.ne.s32.totalorder %s32, %s35
      %p44 = scmp.eq.s32.totalorder %s27, 1
      %p45 = por %p43, %p44
      %p46 = scmp.ne.s32.totalorder %s35, %s36
      %p47 = scmp.eq.s32.totalorder %s27, 0
      %p48 = por %p46, %p47
      %p49 = scmp.ne.s32.totalorder %s35, %s36
      %p50 = scmp.eq.s32.totalorder %s28, 1
      %p51 = por %p49, %p50
      %p53 = scmp.ne.s32.totalorder %s36, %s52
      %p54 = scmp.eq.s32.totalorder %s28, 0
      %p55 = por %p53, %p54
      %s56 = ssub.s32 %s22, %s29
      %p57 = scmp.eq.s32.totalorder %s56, 0
      %s59 = sadd.s32 %s58, 1
      %s60 = scalar_select %p57, %s58, %s59
      %p63 = pneg %p57
      %p64 = scmp.eq.s32.totalorder %s22, 1
      %p65 = por %p63, %p64
      %p66 = scmp.ne.s32.totalorder %s58, %s61
      %p67 = scmp.eq.s32.totalorder %s22, 0
      %p68 = por %p66, %p67
      %p69 = scmp.ne.s32.totalorder %s58, %s61
      %p70 = scmp.eq.s32.totalorder %s27, 1
      %p71 = por %p69, %p70
      %p72 = scmp.ne.s32.totalorder %s61, %s62
      %p73 = scmp.eq.s32.totalorder %s27, 0
      %p74 = por %p72, %p73
      %p75 = scmp.ne.s32.totalorder %s61, %s62
      %p76 = scmp.eq.s32.totalorder %s28, 1
      %p77 = por %p75, %p76
      %p79 = scmp.ne.s32.totalorder %s62, %s78
      %p80 = scmp.eq.s32.totalorder %s28, 0
      %p81 = por %p79, %p80
      %s82 = ssub.s32 %s22, %s29
      %p83 = scmp.eq.s32.totalorder %s82, 0
      %s85 = sadd.s32 %s84, 1
      %s86 = scalar_select %p83, %s84, %s85
      %p89 = pneg %p83
      %p90 = scmp.eq.s32.totalorder %s22, 1
      %p91 = por %p89, %p90
      %p92 = scmp.ne.s32.totalorder %s84, %s87
      %p93 = scmp.eq.s32.totalorder %s22, 0
      %p94 = por %p92, %p93
      %p95 = scmp.ne.s32.totalorder %s84, %s87
      %p96 = scmp.eq.s32.totalorder %s27, 1
      %p97 = por %p95, %p96
      %p98 = scmp.ne.s32.totalorder %s87, %s88
      %p99 = scmp.eq.s32.totalorder %s27, 0
      %p100 = por %p98, %p99
      %p101 = scmp.ne.s32.totalorder %s87, %s88
      %p102 = scmp.eq.s32.totalorder %s28, 1
      %p103 = por %p101, %p102
      %p105 = scmp.ne.s32.totalorder %s88, %s104
      %p106 = scmp.eq.s32.totalorder %s28, 0
      %p107 = por %p105, %p106
      %s108 = ssub.s32 %s22, %s29
      %p109 = scmp.eq.s32.totalorder %s108, 0
      %s111 = sadd.s32 %s110, 1
      %s112 = scalar_select %p109, %s110, %s111
      %p115 = pneg %p109
      %p116 = scmp.eq.s32.totalorder %s22, 1
      %p117 = por %p115, %p116
      %p118 = scmp.ne.s32.totalorder %s110, %s113
      %p119 = scmp.eq.s32.totalorder %s22, 0
      %p120 = por %p118, %p119
      %p121 = scmp.ne.s32.totalorder %s110, %s113
      %p122 = scmp.eq.s32.totalorder %s27, 1
      %p123 = por %p121, %p122
      %p124 = scmp.ne.s32.totalorder %s113, %s114
      %p125 = scmp.eq.s32.totalorder %s27, 0
      %p126 = por %p124, %p125
      %p127 = scmp.ne.s32.totalorder %s113, %s114
      %p128 = scmp.eq.s32.totalorder %s28, 1
      %p129 = por %p127, %p128
      %p131 = scmp.ne.s32.totalorder %s114, %s130
      %p132 = scmp.eq.s32.totalorder %s28, 0
      %p133 = por %p131, %p132
      %p134 = scmp.le.s32.totalorder 1, %s22
      %p135 = scmp.lt.s32.totalorder %s22, 3
      %p136 = pnand %p134, %p135
      %p137 = pneg %p136
      // Predicated region
      $region9: #{tpu_custom_call.1} parent=5 // pred_check
        _
      $region10: #{tpu_custom_call.1} parent=5 // pred_check_branch
        %139 = sbr.rel (%p136) target = $region12
      $region11: #{tpu_custom_call.1} parent=5 // pred_region
        %s140 = ssub.s32 %s22, 1
      $region12: #{tpu_custom_call.1} parent=5 // pred_fallthru
        _
      %p141 = scmp.lt.s32.totalorder %s22, 2
      // Predicated region
      $region13: #{tpu_custom_call.1} parent=5 // pred_check
        %p142 = pneg %p141
      $region14: #{tpu_custom_call.1} parent=5 // pred_check_branch
        %144 = sbr.rel (%p142) target = $region16
      $region15: #{tpu_custom_call.1} parent=5 // pred_region
        // Predicated region
        $region17: #{tpu_custom_call.1} parent=15 // pred_check
          %p145 = pneg %p42
        $region18: #{tpu_custom_call.1} parent=15 // pred_check_branch
          %147 = sbr.rel (%p145) target = $region20
        $region19: #{tpu_custom_call.1} parent=15 // pred_region
          %s148 = sand.u32 %s32, 1
          %s149 = scalar_lea.sflag [#allocation3], %s148
          %s150 = sand.u32 %s32, 1
          %s151 = smul.addr %s150, 8
          %s152 = scalar_lea.vmem [#allocation2], %s151
          %s154 = ssub.s32 128, 128
          %155 = vsyncadd %s149, %s154
          %s156 = smul.addr %s22, 128
          %s157 = scalar_lea.hbm %s0, %s156
          %s159 = sshll.u32 %s152, 4
          %s160 = int_to_ptr.vmem [resolvable:$true] %s159
          %162 = dma.hbm_to_vmem [thread:$0]  %s157, 128, %s160, %s149
        $region20: #{tpu_custom_call.1} parent=15 // pred_fallthru
          _
        // Predicated region
        $region21: #{tpu_custom_call.1} parent=15 // pred_check
          %p163 = pneg %p68
        $region22: #{tpu_custom_call.1} parent=15 // pred_check_branch
          %165 = sbr.rel (%p163) target = $region24
        $region23: #{tpu_custom_call.1} parent=15 // pred_region
          %s166 = sand.u32 %s58, 1
          %s167 = scalar_lea.sflag [#allocation6], %s166
          %s168 = sand.u32 %s58, 1
          %s169 = smul.addr %s168, 8
          %s170 = scalar_lea.vmem [#allocation5], %s169
          %s172 = ssub.s32 128, 128
          %173 = vsyncadd %s167, %s172
          %s174 = smul.addr %s22, 128
          %s175 = scalar_lea.hbm %s1, %s174
          %s177 = sshll.u32 %s170, 4
          %s178 = int_to_ptr.vmem [resolvable:$true] %s177
          %180 = dma.hbm_to_vmem [thread:$0]  %s175, 128, %s178, %s167
        $region24: #{tpu_custom_call.1} parent=15 // pred_fallthru
          _
      $region16: #{tpu_custom_call.1} parent=5 // pred_fallthru
        _
      %p181 = scmp.le.s32.totalorder 1, %s22
      %p182 = scmp.lt.s32.totalorder %s22, 3
      %p183 = pnand %p181, %p182
      %p184 = pneg %p183
      // Predicated region
      $region25: #{tpu_custom_call.1} parent=5 // pred_check
        _
      $region26: #{tpu_custom_call.1} parent=5 // pred_check_branch
        %186 = sbr.rel (%p183) target = $region28
      $region27: #{tpu_custom_call.1} parent=5 // pred_region
        %s187 = ssub.s32 %s22, 1
        %s188 = sand.u32 %s35, 1
        %s189 = scalar_lea.sflag [#allocation3], %s188
        %s190 = sand.u32 %s35, 1
        %s191 = smul.addr %s190, 8
        %s192 = scalar_lea.vmem [#allocation2], %s191
        // Predicated region
        $region29: #{tpu_custom_call.1} parent=27 // pred_check
          %p193 = pneg %p48
        $region30: #{tpu_custom_call.1} parent=27 // pred_check_branch
          %195 = sbr.rel (%p193) target = $region32
        $region31: #{tpu_custom_call.1} parent=27 // pred_region
          %196 = dma.done %s189, 128
        $region32: #{tpu_custom_call.1} parent=27 // pred_fallthru
          _
        %s197 = sand.u32 %s61, 1
        %s198 = scalar_lea.sflag [#allocation6], %s197
        %s199 = sand.u32 %s61, 1
        %s200 = smul.addr %s199, 8
        %s201 = scalar_lea.vmem [#allocation5], %s200
        // Predicated region
        $region33: #{tpu_custom_call.1} parent=27 // pred_check
          %p202 = pneg %p74
        $region34: #{tpu_custom_call.1} parent=27 // pred_check_branch
          %204 = sbr.rel (%p202) target = $region36
        $region35: #{tpu_custom_call.1} parent=27 // pred_region
          %205 = dma.done %s198, 128
        $region36: #{tpu_custom_call.1} parent=27 // pred_fallthru
          _
        %s206 = sand.u32 %s35, 1
        %s207 = scalar_lea.sflag [#allocation3], %s206
        %s208 = sand.u32 %s35, 1
        %s209 = smul.addr %s208, 8
        %s210 = scalar_lea.vmem [#allocation2], %s209
        %p211 = pneg %p48
        %p212 = pneg %p45
        %s213 = sand.u32 %s61, 1
        %s214 = scalar_lea.sflag [#allocation6], %s213
        %s215 = sand.u32 %s61, 1
        %s216 = smul.addr %s215, 8
        %s217 = scalar_lea.vmem [#allocation5], %s216
        %p218 = pneg %p74
        %p219 = pneg %p71
        %p220 = pneg %p100
        %p221 = pneg %p97
        %s222 = sand.u32 %s87, 1
        %s223 = scalar_lea.sflag [#allocation4], %s222
        %s224 = sand.u32 %s87, 1
        %s225 = smul.addr %s224, 8
        %s226 = scalar_lea.vmem [#allocation7], %s225
        %p227 = pneg %p126
        %p228 = pneg %p123
        %s229 = sand.u32 %s113, 1
        %s230 = scalar_lea.sflag [#allocation9], %s229
        %s231 = sand.u32 %s113, 1
        %s232 = smul.addr %s231, 8
        %s233 = scalar_lea.vmem [#allocation8], %s232
        %v234 = vld [vmem:[%s192] sm:$0xff]
        %v235 = vld [vmem:[%s201] sm:$0xff]
        %v236 = vmul.f32 %v234, 0.5
        %v237 = vtanh.pop %v236
        %v238 = vmul.f32 %v237, 0.5
        %v239 = vadd.f32 %v238, 0.5
        %v240 = vmul.f32 %v239, %v235
        %241 = vadd.xlane.f32.xlu0 %v240
        %v242 = vpop.xlane.xlu0 %241
        %v243 = vrot.slane %v242, 4
        %v244 = vadd.f32 %v242, %v243
        %v245 = vrot.slane %v244, 2
        %v246 = vadd.f32 %v244, %v245
        %v247 = vrot.slane %v246, 1
        %v248 = vadd.f32 %v246, %v247
        %s249 = vtos %v248
        %v250 = vadd.f32 %v239, %v235
        %251 = vadd.xlane.f32.xlu0 %v250
        %v252 = vpop.xlane.xlu0 %251
        %v253 = vrot.slane %v252, 4
        %v254 = vadd.f32 %v252, %v253
        %v255 = vrot.slane %v254, 2
        %v256 = vadd.f32 %v254, %v255
        %v257 = vrot.slane %v256, 1
        %v258 = vadd.f32 %v256, %v257
        %s259 = vtos %v258
        %v260 = vstv %s249
        %261 = vst [vmem:[%s226] sm:$0xff] %v260
        %v262 = vstv %s259
        %263 = vst [vmem:[%s233] sm:$0xff] %v262
        %s264 = sand.u32 %s87, 1
        %s265 = scalar_lea.sflag [#allocation4], %s264
        %s266 = sand.u32 %s87, 1
        %s267 = smul.addr %s266, 8
        %s268 = scalar_lea.vmem [#allocation7], %s267
        %s269 = sand.u32 %s113, 1
        %s270 = scalar_lea.sflag [#allocation9], %s269
        %s271 = sand.u32 %s113, 1
        %s272 = smul.addr %s271, 8
        %s273 = scalar_lea.vmem [#allocation8], %s272
        // Predicated region
        $region37: #{tpu_custom_call.1} parent=27 // pred_check
          %p274 = pneg %p97
        $region38: #{tpu_custom_call.1} parent=27 // pred_check_branch
          %276 = sbr.rel (%p274) target = $region40
        $region39: #{tpu_custom_call.1} parent=27 // pred_region
          %s278 = ssub.s32 128, 128
          %279 = vsyncadd %s265, %s278
          %s280 = smul.addr %s27, 128
          %s281 = scalar_lea.hbm %s2, %s280
          %s283 = sshll.u32 %s268, 4
          %s284 = int_to_ptr.vmem [resolvable:$true] %s283
          %286 = dma.vmem_to_hbm [thread:$0]  %s284, 128, %s281, %s265
        $region40: #{tpu_custom_call.1} parent=27 // pred_fallthru
          _
        // Predicated region
        $region41: #{tpu_custom_call.1} parent=27 // pred_check
          %p287 = pneg %p123
        $region42: #{tpu_custom_call.1} parent=27 // pred_check_branch
          %289 = sbr.rel (%p287) target = $region44
        $region43: #{tpu_custom_call.1} parent=27 // pred_region
          %s291 = ssub.s32 128, 128
          %292 = vsyncadd %s270, %s291
          %s293 = smul.addr %s27, 128
          %s294 = scalar_lea.hbm %s3, %s293
          %s296 = sshll.u32 %s273, 4
          %s297 = int_to_ptr.vmem [resolvable:$true] %s296
          %299 = dma.vmem_to_hbm [thread:$0]  %s297, 128, %s294, %s270
        $region44: #{tpu_custom_call.1} parent=27 // pred_fallthru
          _
      $region28: #{tpu_custom_call.1} parent=5 // pred_fallthru
        _
      %p300 = scmp.le.s32.totalorder 2, %s22
      // Predicated region
      $region45: #{tpu_custom_call.1} parent=5 // pred_check
        %p301 = pneg %p300
      $region46: #{tpu_custom_call.1} parent=5 // pred_check_branch
        %303 = sbr.rel (%p301) target = $region48
      $region47: #{tpu_custom_call.1} parent=5 // pred_region
        %s304 = ssub.s32 %s22, 2
        // Predicated region
        $region49: #{tpu_custom_call.1} parent=47 // pred_check
          %p305 = pneg %p103
        $region50: #{tpu_custom_call.1} parent=47 // pred_check_branch
          %307 = sbr.rel (%p305) target = $region52
        $region51: #{tpu_custom_call.1} parent=47 // pred_region
          %s308 = sand.u32 %s88, 1
          %s309 = scalar_lea.sflag [#allocation4], %s308
          %s310 = sand.u32 %s88, 1
          %s311 = smul.addr %s310, 8
          %s312 = scalar_lea.vmem [#allocation7], %s311
          %313 = dma.done %s309, 128
        $region52: #{tpu_custom_call.1} parent=47 // pred_fallthru
          _
        // Predicated region
        $region53: #{tpu_custom_call.1} parent=47 // pred_check
          %p314 = pneg %p129
        $region54: #{tpu_custom_call.1} parent=47 // pred_check_branch
          %316 = sbr.rel (%p314) target = $region56
        $region55: #{tpu_custom_call.1} parent=47 // pred_region
          %s317 = sand.u32 %s114, 1
          %s318 = scalar_lea.sflag [#allocation9], %s317
          %s319 = sand.u32 %s114, 1
          %s320 = smul.addr %s319, 8
          %s321 = scalar_lea.vmem [#allocation8], %s320
          %322 = dma.done %s318, 128
        $region56: #{tpu_custom_call.1} parent=47 // pred_fallthru
          _
      $region48: #{tpu_custom_call.1} parent=5 // pred_fallthru
        _
    $region6: #{tpu_custom_call.1} parent=1 // loop_footer
      %s26 = sadd.s32 1, %s22
    $region7: #{tpu_custom_call.1} parent=1 // loop_footer_branch
      %21 = sbr.rel target = $region3
    $region8: #{tpu_custom_call.1} parent=1 // loop_exit
      _
    %323 = vsyncpa [#allocation3], 1
    %s324 = scalar_lea.sflag [#allocation3], 1
    %325 = vsyncpa %s324, 1
    %326 = vsyncpa [#allocation6], 1
    %s327 = scalar_lea.sflag [#allocation6], 1
    %328 = vsyncpa %s327, 1
    %329 = vsyncpa [#allocation4], 1
    %s330 = scalar_lea.sflag [#allocation4], 1
    %331 = vsyncpa %s330, 1
    %332 = vsyncpa [#allocation9], 1
    %s333 = scalar_lea.sflag [#allocation9], 1
    %334 = vsyncpa %s333, 1

</llo_original>
